<compile_context>
chip_gen: v5e
topology: v5e:2x2
jax: 0.10.0
libtpu: 0.0.40
codegen_flags: <defaults>
</compile_context>

<pallas_src>
import functools

import jax
import jax.numpy as jnp
from jax.experimental import pallas as pl
from jax.experimental.pallas import tpu as pltpu


def _round_up(x, m):
    return (x + m - 1) // m * m


# ----------------------------------------------------------------------------- kernels
def _noisy_linear_train_kernel(x_ref, wmu_ref, wsig_ref, ein_ref, eout_ref,
                               bmu_ref, bsig_ref, beps_ref, o_ref, acc_ref):
    k = pl.program_id(2)

    @pl.when(k == 0)
    def _():
        acc_ref[...] = jnp.zeros_like(acc_ref)

    # Rebuild the factorized epsilon tile on-chip (VPU outer-product broadcast);
    # no full epsilon matrix ever leaves HBM.
    w_eps = ein_ref[...] * eout_ref[...]                       # (tk,1)*(1,tn) -> (tk,tn)
    w = wmu_ref[...] + wsig_ref[...] * w_eps                   # noisy weight tile (tk,tn)
    acc_ref[...] += jnp.dot(x_ref[...], w,
                            preferred_element_type=jnp.float32)  # canonical (M,K)@(K,N)

    @pl.when(k == pl.num_programs(2) - 1)
    def _():
        b = bmu_ref[...] + bsig_ref[...] * beps_ref[...]       # (1, tn)
        o_ref[...] = (acc_ref[...] + b).astype(o_ref.dtype)


def _noisy_linear_eval_kernel(x_ref, wmu_ref, bmu_ref, o_ref, acc_ref):
    k = pl.program_id(2)

    @pl.when(k == 0)
    def _():
        acc_ref[...] = jnp.zeros_like(acc_ref)

    acc_ref[...] += jnp.dot(x_ref[...], wmu_ref[...],
                            preferred_element_type=jnp.float32)

    @pl.when(k == pl.num_programs(2) - 1)
    def _():
        o_ref[...] = (acc_ref[...] + bmu_ref[...]).astype(o_ref.dtype)


# ----------------------------------------------------------------------------- wrapper
@functools.partial(jax.jit, static_argnames=("training",))
def noisy_linear_forward(x, params, training=True):
    """Pallas implementation of NoisyLinear.forward.

    x: (B, in_features) float32
    params: dict with weight_mu/weight_sigma (out, in),
            weight_eps_in (in,), weight_eps_out (out,),
            bias_mu/bias_sigma/bias_epsilon (out,)
    """
    B, in_f = x.shape
    out_f = params["weight_mu"].shape[0]

    # Tile sizes: lane-dense (128-multiples) on N/K, sublane-aligned (8-multiple) on M.
    # Sized conservatively so double-buffered streams fit v7x's smaller scoped VMEM.
    tm = min(128, _round_up(B, 8))
    tn = min(256, _round_up(out_f, 128))
    tk = min(512, _round_up(in_f, 128))
    B_p = _round_up(B, tm)
    N_p = _round_up(out_f, tn)
    K_p = _round_up(in_f, tk)

    # Zero padding keeps the math exact: zero x columns / zero weight rows contribute
    # nothing; padded output rows/cols are sliced off at the end.
    x_p = jnp.pad(x, ((0, B_p - B), (0, K_p - in_f)))
    # Pre-transpose weights once in the wrapper (HBM layout (K, N)) -> no in-kernel .T
    wmu_t = jnp.pad(params["weight_mu"].T, ((0, K_p - in_f), (0, N_p - out_f)))
    bmu = jnp.pad(params["bias_mu"], (0, N_p - out_f)).reshape(1, N_p)

    grid = (B_p // tm, N_p // tn, K_p // tk)

    x_spec = pl.BlockSpec((tm, tk), lambda i, j, k: (i, k))
    w_spec = pl.BlockSpec((tk, tn), lambda i, j, k: (k, j))
    col_spec = pl.BlockSpec((tk, 1), lambda i, j, k: (k, 0))   # eps_in column
    row_spec = pl.BlockSpec((1, tn), lambda i, j, k: (0, j))   # eps_out / bias rows
    out_spec = pl.BlockSpec((tm, tn), lambda i, j, k: (i, j))

    compiler_params = pltpu.CompilerParams(
        dimension_semantics=("parallel", "parallel", "arbitrary"),
        vmem_limit_bytes=32 * 1024 * 1024,
    )
    out_shape = jax.ShapeDtypeStruct((B_p, N_p), x.dtype)
    scratch = [pltpu.VMEM((tm, tn), jnp.float32)]

    if training:
        wsig_t = jnp.pad(params["weight_sigma"].T,
                         ((0, K_p - in_f), (0, N_p - out_f)))
        ein = jnp.pad(params["weight_eps_in"], (0, K_p - in_f)).reshape(K_p, 1)
        eout = jnp.pad(params["weight_eps_out"], (0, N_p - out_f)).reshape(1, N_p)
        bsig = jnp.pad(params["bias_sigma"], (0, N_p - out_f)).reshape(1, N_p)
        beps = jnp.pad(params["bias_epsilon"], (0, N_p - out_f)).reshape(1, N_p)

        y_p = pl.pallas_call(
            _noisy_linear_train_kernel,
            out_shape=out_shape,
            grid_spec=pltpu.PrefetchScalarGridSpec(
                num_scalar_prefetch=0,
                grid=grid,
                in_specs=[x_spec, w_spec, w_spec, col_spec, row_spec,
                          row_spec, row_spec, row_spec],
                out_specs=out_spec,
                scratch_shapes=scratch),
            compiler_params=compiler_params,
        )(x_p, wmu_t, wsig_t, ein, eout, bmu, bsig, beps)
    else:
        y_p = pl.pallas_call(
            _noisy_linear_eval_kernel,
            out_shape=out_shape,
            grid_spec=pltpu.PrefetchScalarGridSpec(
                num_scalar_prefetch=0,
                grid=grid,
                in_specs=[x_spec, w_spec, row_spec],
                out_specs=out_spec,
                scratch_shapes=scratch),
            compiler_params=compiler_params,
        )(x_p, wmu_t, bmu)

    return y_p[:B, :out_f]


# ----------------------------------------------------------------------------- param init
def _scale_noise(key, size):
    """sign(x) * sqrt(|x|) for x ~ N(0, 1)  (matches NoisyLinear._scale_noise)."""
    x = jax.random.normal(key, (size,), dtype=jnp.float32)
    return jnp.sign(x) * jnp.sqrt(jnp.abs(x))


def init_noisy_linear(key, in_features, out_features, std_init=0.5):
    """Deterministic re-implementation of reset_parameters() + reset_noise().

    Stores the FACTORIZED noise vectors (eps_in, eps_out) instead of the dense
    weight_epsilon buffer; the kernel reconstructs eps_out ⊗ eps_in on-chip.
    """
    k_wmu, k_bmu, k_ein, k_eout = jax.random.split(key, 4)
    mu_range = 1.0 / (in_features ** 0.5)

    weight_mu = jax.random.uniform(
        k_wmu, (out_features, in_features), jnp.float32, -mu_range, mu_range)
    bias_mu = jax.random.uniform(
        k_bmu, (out_features,), jnp.float32, -mu_range, mu_range)

    weight_sigma = jnp.full((out_features, in_features),
                            std_init / (in_features ** 0.5), jnp.float32)
    bias_sigma = jnp.full((out_features,),
                          std_init / (out_features ** 0.5), jnp.float32)

    eps_in = _scale_noise(k_ein, in_features)
    eps_out = _scale_noise(k_eout, out_features)

    return dict(weight_mu=weight_mu, weight_sigma=weight_sigma,
                weight_eps_in=eps_in, weight_eps_out=eps_out,
                bias_mu=bias_mu, bias_sigma=bias_sigma, bias_epsilon=eps_out)


# ----------------------------------------------------------------------------- reference
def _reference(x, params, training):
    if training:
        w_eps = jnp.outer(params["weight_eps_out"], params["weight_eps_in"])
        w = params["weight_mu"] + params["weight_sigma"] * w_eps
        b = params["bias_mu"] + params["bias_sigma"] * params["bias_epsilon"]
    else:
        w, b = params["weight_mu"], params["bias_mu"]
    return jnp.matmul(x, w.T, precision=jax.lax.Precision.HIGHEST) + b


# ----------------------------------------------------------------------------- main
if __name__ == "__main__":
    key = jax.random.PRNGKey(0)
    k_param, k_x, k_param2, k_x2 = jax.random.split(key, 4)

    # Small shapes matching the module's typical DQN head.
    batch, in_features, out_features = 8, 32, 32
    params = init_noisy_linear(k_param, in_features, out_features, std_init=0.5)
    x = jax.random.normal(k_x, (batch, in_features), dtype=jnp.float32)

    y = jax.block_until_ready(noisy_linear_forward(x, params, training=True))
    y_ref = _reference(x, params, training=True)
    assert jnp.allclose(y, y_ref, atol=1e-3, rtol=1e-3), "train mismatch (small)"

    y_eval = jax.block_until_ready(noisy_linear_forward(x, params, training=False))
    y_eval_ref = _reference(x, params, training=False)
    assert jnp.allclose(y_eval, y_eval_ref, atol=1e-3, rtol=1e-3), "eval mismatch (small)"

    # A slightly larger shape that exercises a real multi-tile grid (M,N,K > 1)
    # with K-accumulation and zero-padding of non-128-multiple dims.
    B2, in2, out2 = 64, 640, 384
    params2 = init_noisy_linear(k_param2, in2, out2, std_init=0.5)
    x2 = jax.random.normal(k_x2, (B2, in2), dtype=jnp.float32)

    y2 = jax.block_until_ready(noisy_linear_forward(x2, params2, training=True))
    y2_ref = _reference(x2, params2, training=True)
    assert jnp.allclose(y2, y2_ref, atol=1e-3, rtol=1e-3), "train mismatch (tiled)"

    print("KERNEL_OK")
</pallas_src>

<mosaic_0001>
module attributes {stable_mosaic.version = 11 : i64} {
  func.func @_noisy_linear_train_kernel(%arg0: i32, %arg1: i32, %arg2: i32, %arg3: memref<8x128xf32, #tpu.memory_space<vmem>>, %arg4: memref<128x128xf32, #tpu.memory_space<vmem>>, %arg5: memref<128x128xf32, #tpu.memory_space<vmem>>, %arg6: memref<128x1xf32, #tpu.memory_space<vmem>>, %arg7: memref<1x128xf32, #tpu.memory_space<vmem>>, %arg8: memref<1x128xf32, #tpu.memory_space<vmem>>, %arg9: memref<1x128xf32, #tpu.memory_space<vmem>>, %arg10: memref<1x128xf32, #tpu.memory_space<vmem>>, %arg11: memref<8x128xf32, #tpu.memory_space<vmem>>, %arg12: memref<8x128xf32, #tpu.memory_space<vmem>>) attributes {dimension_semantics = [#tpu.dimension_semantics<parallel>, #tpu.dimension_semantics<parallel>, #tpu.dimension_semantics<arbitrary>], iteration_bounds = array<i64: 1, 1, 1>, scalar_prefetch = 0 : i64, scratch_operands = 1 : i64, tpu.core_type = #tpu.core_type<tc>, window_params = [{transform_indices = @transform_0, window_bounds = array<i64: 8, 128>}, {transform_indices = @transform_1, window_bounds = array<i64: 128, 128>}, {transform_indices = @transform_2, window_bounds = array<i64: 128, 128>}, {transform_indices = @transform_3, window_bounds = array<i64: 128, 1>}, {transform_indices = @transform_4, window_bounds = array<i64: 1, 128>}, {transform_indices = @transform_5, window_bounds = array<i64: 1, 128>}, {transform_indices = @transform_6, window_bounds = array<i64: 1, 128>}, {transform_indices = @transform_7, window_bounds = array<i64: 1, 128>}, {transform_indices = @transform_8, window_bounds = array<i64: 8, 128>}]} {
    %c0_i32 = arith.constant 0 : i32
    %0 = arith.cmpi eq, %arg2, %c0_i32 : i32
    %1 = arith.extui %0 : i1 to i32
    %c0_i32_0 = arith.constant 0 : i32
    %2 = arith.cmpi ne, %1, %c0_i32_0 : i32
    scf.if %2 {
      %cst_16 = arith.constant 0.000000e+00 : f32
      %20 = vector.broadcast %cst_16 : f32 to vector<8x128xf32>
      %c0_17 = arith.constant 0 : index
      %c0_18 = arith.constant 0 : index
      %21 = vector.load %arg12[%c0_17, %c0_18] : memref<8x128xf32, #tpu.memory_space<vmem>>, vector<8x128xf32>
      tpu.vector_store %arg12[%c0_17, %c0_18], %20 {strides = array<i32>} : memref<8x128xf32, #tpu.memory_space<vmem>>, vector<8x128xf32>,
    } else {
    }
    %c0 = arith.constant 0 : index
    %c0_1 = arith.constant 0 : index
    %3 = vector.load %arg6[%c0, %c0_1] : memref<128x1xf32, #tpu.memory_space<vmem>>, vector<128x1xf32>
    %c0_2 = arith.constant 0 : index
    %c0_3 = arith.constant 0 : index
    %4 = vector.load %arg7[%c0_2, %c0_3] : memref<1x128xf32, #tpu.memory_space<vmem>>, vector<1x128xf32>
    %5 = vector.broadcast %3 : vector<128x1xf32> to vector<128x128xf32>
    %6 = vector.broadcast %4 : vector<1x128xf32> to vector<128x128xf32>
    %7 = arith.mulf %5, %6 : vector<128x128xf32>
    %c0_4 = arith.constant 0 : index
    %c0_5 = arith.constant 0 : index
    %8 = vector.load %arg4[%c0_4, %c0_5] : memref<128x128xf32, #tpu.memory_space<vmem>>, vector<128x128xf32>
    %c0_6 = arith.constant 0 : index
    %c0_7 = arith.constant 0 : index
    %9 = vector.load %arg5[%c0_6, %c0_7] : memref<128x128xf32, #tpu.memory_space<vmem>>, vector<128x128xf32>
    %10 = arith.mulf %9, %7 : vector<128x128xf32>
    %11 = arith.addf %8, %10 : vector<128x128xf32>
    %c0_8 = arith.constant 0 : index
    %c0_9 = arith.constant 0 : index
    %12 = vector.load %arg12[%c0_8, %c0_9] : memref<8x128xf32, #tpu.memory_space<vmem>>, vector<8x128xf32>
    %c0_10 = arith.constant 0 : index
    %c0_11 = arith.constant 0 : index
    %13 = vector.load %arg3[%c0_10, %c0_11] : memref<8x128xf32, #tpu.memory_space<vmem>>, vector<8x128xf32>
    %cst = arith.constant dense<0.000000e+00> : vector<8x128xf32>
    %14 = tpu.matmul %13, %11, %cst {dimension_numbers = #tpu.dot_dimension_numbers<[1], [0], [0], [1], [0, 0, 1, 1], [], []>} : vector<8x128xf32>, vector<128x128xf32>, vector<8x128xf32> -> vector<8x128xf32>
    %15 = arith.addf %12, %14 : vector<8x128xf32>
    %c0_12 = arith.constant 0 : index
    %c0_13 = arith.constant 0 : index
    %16 = vector.load %arg12[%c0_12, %c0_13] : memref<8x128xf32, #tpu.memory_space<vmem>>, vector<8x128xf32>
    tpu.vector_store %arg12[%c0_12, %c0_13], %15 {strides = array<i32>} : memref<8x128xf32, #tpu.memory_space<vmem>>, vector<8x128xf32>,
    %c0_i32_14 = arith.constant 0 : i32
    %17 = arith.cmpi eq, %arg2, %c0_i32_14 : i32
    %18 = arith.extui %17 : i1 to i32
    %c0_i32_15 = arith.constant 0 : i32
    %19 = arith.cmpi ne, %18, %c0_i32_15 : i32
    scf.if %19 {
      %c0_16 = arith.constant 0 : index
      %c0_17 = arith.constant 0 : index
      %20 = vector.load %arg8[%c0_16, %c0_17] : memref<1x128xf32, #tpu.memory_space<vmem>>, vector<1x128xf32>
      %c0_18 = arith.constant 0 : index
      %c0_19 = arith.constant 0 : index
      %21 = vector.load %arg9[%c0_18, %c0_19] : memref<1x128xf32, #tpu.memory_space<vmem>>, vector<1x128xf32>
      %c0_20 = arith.constant 0 : index
      %c0_21 = arith.constant 0 : index
      %22 = vector.load %arg10[%c0_20, %c0_21] : memref<1x128xf32, #tpu.memory_space<vmem>>, vector<1x128xf32>
      %23 = arith.mulf %21, %22 : vector<1x128xf32>
      %24 = arith.addf %20, %23 : vector<1x128xf32>
      %c0_22 = arith.constant 0 : index
      %c0_23 = arith.constant 0 : index
      %25 = vector.load %arg12[%c0_22, %c0_23] : memref<8x128xf32, #tpu.memory_space<vmem>>, vector<8x128xf32>
      %26 = vector.broadcast %24 : vector<1x128xf32> to vector<8x128xf32>
      %27 = arith.addf %25, %26 : vector<8x128xf32>
      %c0_24 = arith.constant 0 : index
      %c0_25 = arith.constant 0 : index
      %28 = vector.load %arg11[%c0_24, %c0_25] : memref<8x128xf32, #tpu.memory_space<vmem>>, vector<8x128xf32>
      tpu.vector_store %arg11[%c0_24, %c0_25], %27 {strides = array<i32>} : memref<8x128xf32, #tpu.memory_space<vmem>>, vector<8x128xf32>,
    } else {
    }
    return
  }
  func.func @transform_0(%arg0: i32, %arg1: i32, %arg2: i32) -> (i32, i32) {
    %c0_i32 = arith.constant 0 : i32
    return %arg0, %arg2 : i32, i32
  }
  func.func @transform_1(%arg0: i32, %arg1: i32, %arg2: i32) -> (i32, i32) {
    %c0_i32 = arith.constant 0 : i32
    return %arg2, %arg1 : i32, i32
  }
  func.func @transform_2(%arg0: i32, %arg1: i32, %arg2: i32) -> (i32, i32) {
    %c0_i32 = arith.constant 0 : i32
    return %arg2, %arg1 : i32, i32
  }
  func.func @transform_3(%arg0: i32, %arg1: i32, %arg2: i32) -> (i32, i32) {
    %c0_i32 = arith.constant 0 : i32
    %c0_i32_0 = arith.constant 0 : i32
    return %arg2, %c0_i32 : i32, i32
  }
  func.func @transform_4(%arg0: i32, %arg1: i32, %arg2: i32) -> (i32, i32) {
    %c0_i32 = arith.constant 0 : i32
    %c0_i32_0 = arith.constant 0 : i32
    return %c0_i32, %arg1 : i32, i32
  }
  func.func @transform_5(%arg0: i32, %arg1: i32, %arg2: i32) -> (i32, i32) {
    %c0_i32 = arith.constant 0 : i32
    %c0_i32_0 = arith.constant 0 : i32
    return %c0_i32, %arg1 : i32, i32
  }
  func.func @transform_6(%arg0: i32, %arg1: i32, %arg2: i32) -> (i32, i32) {
    %c0_i32 = arith.constant 0 : i32
    %c0_i32_0 = arith.constant 0 : i32
    return %c0_i32, %arg1 : i32, i32
  }
  func.func @transform_7(%arg0: i32, %arg1: i32, %arg2: i32) -> (i32, i32) {
    %c0_i32 = arith.constant 0 : i32
    %c0_i32_0 = arith.constant 0 : i32
    return %c0_i32, %arg1 : i32, i32
  }
  func.func @transform_8(%arg0: i32, %arg1: i32, %arg2: i32) -> (i32, i32) {
    %c0_i32 = arith.constant 0 : i32
    return %arg0, %arg1 : i32, i32
  }
}

</mosaic_0001>

<llo_original>
// kernel: noisy_linear_forward.1
$region0: #{noisy_linear_forward.1}
  #allocation0 [shape = 'u32[]', space=smem, size = 0x4, offset = 0x4, fixed_abs, tag = 'smem constant byte address 0x4 - core index']
  #allocation1 [shape = 'u32[72,128]{1,0:T(1,128)}', space=vmem, size = 0x9000, scoped, tag = 'internal scratch']
  #allocation2 [shape = 'f32[8,128]{1,0:T(8,128)}', space=vmem, size = 0x1000, scoped, tag = 'scratch operand']
  %s0 = inlined_call_operand.vmem [shape: f32[8,128], index: 0, kind: input, shape index: {}]
  %s1 = inlined_call_operand.vmem [shape: f32[128,128], index: 1, kind: input, shape index: {}]
  %s2 = inlined_call_operand.vmem [shape: f32[128,128], index: 2, kind: input, shape index: {}]
  %s3 = inlined_call_operand.vmem [shape: f32[128,1], index: 3, kind: input, shape index: {}]
  %s4 = inlined_call_operand.vmem [shape: f32[1,128], index: 4, kind: input, shape index: {}]
  %s5 = inlined_call_operand.vmem [shape: f32[1,128], index: 5, kind: input, shape index: {}]
  %s6 = inlined_call_operand.vmem [shape: f32[1,128], index: 6, kind: input, shape index: {}]
  %s7 = inlined_call_operand.vmem [shape: f32[1,128], index: 7, kind: input, shape index: {}]
  %s8 = inlined_call_operand.hbm [shape: f32[8,128], index: 8, kind: output, shape index: {}]
  %s9 = sld [smem:[#allocation0]]
  $region50: #{noisy_linear_forward.1} parent=0
    _
  %s11 = ssub.s32 1, %s9
  %s12 = scalar_select 0, %s11, %s9
  $region1: #{noisy_linear_forward.1} parent=0
    #allocation3 [shape = 'u8[4096]{0}', space=vmem, size = 0x1000, scoped, tag = 'output window, operand 0, single buffered']
    #allocation4 [shape = 's32[1]{0}', space=sflag, size = 0x4, scoped, tag = 'scoped memory for noisy_linear_forward.1']
    %13 = vsyncpa [#allocation4], 0
    // Predicated region
    $region2: #{noisy_linear_forward.1} parent=1 // pred_check
      _
    $region3: #{noisy_linear_forward.1} parent=1 // pred_check_branch
      %15 = sbr.rel (0) target = $region5
    $region4: #{noisy_linear_forward.1} parent=1 // pred_region
      _
    $region5: #{noisy_linear_forward.1} parent=1 // pred_fallthru
      _
    // Predicated region
    $region6: #{noisy_linear_forward.1} parent=1 // pred_check
      _
    $region7: #{noisy_linear_forward.1} parent=1 // pred_check_branch
      %17 = sbr.rel (0) target = $region9
    $region8: #{noisy_linear_forward.1} parent=1 // pred_region
      _
    $region9: #{noisy_linear_forward.1} parent=1 // pred_fallthru
      _
    // Predicated region
    $region10: #{noisy_linear_forward.1} parent=1 // pred_check
      _
    $region11: #{noisy_linear_forward.1} parent=1 // pred_check_branch
      %19 = sbr.rel (0) target = $region13
    $region12: #{noisy_linear_forward.1} parent=1 // pred_region
      _
    $region13: #{noisy_linear_forward.1} parent=1 // pred_fallthru
      _
    // Predicated region
    $region14: #{noisy_linear_forward.1} parent=1 // pred_check
      _
    $region15: #{noisy_linear_forward.1} parent=1 // pred_check_branch
      %21 = sbr.rel (0) target = $region17
    $region16: #{noisy_linear_forward.1} parent=1 // pred_region
      _
    $region17: #{noisy_linear_forward.1} parent=1 // pred_fallthru
      _
    // Predicated region
    $region18: #{noisy_linear_forward.1} parent=1 // pred_check
      _
    $region19: #{noisy_linear_forward.1} parent=1 // pred_check_branch
      %23 = sbr.rel (0) target = $region21
    $region20: #{noisy_linear_forward.1} parent=1 // pred_region
      _
    $region21: #{noisy_linear_forward.1} parent=1 // pred_fallthru
      _
    // Predicated region
    $region22: #{noisy_linear_forward.1} parent=1 // pred_check
      _
    $region23: #{noisy_linear_forward.1} parent=1 // pred_check_branch
      %25 = sbr.rel (0) target = $region25
    $region24: #{noisy_linear_forward.1} parent=1 // pred_region
      _
    $region25: #{noisy_linear_forward.1} parent=1 // pred_fallthru
      _
    // Predicated region
    $region26: #{noisy_linear_forward.1} parent=1 // pred_check
      _
    $region27: #{noisy_linear_forward.1} parent=1 // pred_check_branch
      %27 = sbr.rel (0) target = $region29
    $region28: #{noisy_linear_forward.1} parent=1 // pred_region
      _
    $region29: #{noisy_linear_forward.1} parent=1 // pred_fallthru
      _
    // Predicated region
    $region30: #{noisy_linear_forward.1} parent=1 // pred_check
      _
    $region31: #{noisy_linear_forward.1} parent=1 // pred_check_branch
      %29 = sbr.rel (0) target = $region33
    $region32: #{noisy_linear_forward.1} parent=1 // pred_region
      _
    $region33: #{noisy_linear_forward.1} parent=1 // pred_fallthru
      _
    %p30 = scmp.eq.s32.totalorder 0, 0
    // Predicated region
    $region34: #{noisy_linear_forward.1} parent=1 // pred_check
      %p31 = pneg %p30
    $region35: #{noisy_linear_forward.1} parent=1 // pred_check_branch
      %33 = sbr.rel (%p31) target = $region37
    $region36: #{noisy_linear_forward.1} parent=1 // pred_region
      %34 = vst [vmem:[#allocation2] sm:$0xff] 0.0
    $region37: #{noisy_linear_forward.1} parent=1 // pred_fallthru
      _
    %v35 = vld [vmem:[%s3] sm:$0xff]
    %v36 = vld [vmem:[%s3 + $0x8] sm:$0xff]
    %v37 = vld [vmem:[%s3 + $0x10] sm:$0xff]
    %v38 = vld [vmem:[%s3 + $0x18] sm:$0xff]
    %v39 = vld [vmem:[%s3 + $0x20] sm:$0xff]
    %v40 = vld [vmem:[%s3 + $0x28] sm:$0xff]
    %v41 = vld [vmem:[%s3 + $0x30] sm:$0xff]
    %v42 = vld [vmem:[%s3 + $0x38] sm:$0xff]
    %v43 = vld [vmem:[%s3 + $0x40] sm:$0xff]
    %v44 = vld [vmem:[%s3 + $0x48] sm:$0xff]
    %v45 = vld [vmem:[%s3 + $0x50] sm:$0xff]
    %v46 = vld [vmem:[%s3 + $0x58] sm:$0xff]
    %v47 = vld [vmem:[%s3 + $0x60] sm:$0xff]
    %v48 = vld [vmem:[%s3 + $0x68] sm:$0xff]
    %v49 = vld [vmem:[%s3 + $0x70] sm:$0xff]
    %v50 = vld [vmem:[%s3 + $0x78] sm:$0xff]
    %v51 = vld [vmem:[%s4] sm:$0x1]
    %53 = vset.pattern.permute.xlu0 0
    %54 = vperm.xlu0 %53, %v35
    %v55 = vpop.permute.xlu0 %54
    %58 = vset.pattern.permute.xlu0 0
    %59 = vperm.xlu0 %58, %v36
    %v60 = vpop.permute.xlu0 %59
    %63 = vset.pattern.permute.xlu0 0
    %64 = vperm.xlu0 %63, %v37
    %v65 = vpop.permute.xlu0 %64
    %68 = vset.pattern.permute.xlu0 0
    %69 = vperm.xlu0 %68, %v38
    %v70 = vpop.permute.xlu0 %69
    %73 = vset.pattern.permute.xlu0 0
    %74 = vperm.xlu0 %73, %v39
    %v75 = vpop.permute.xlu0 %74
    %78 = vset.pattern.permute.xlu0 0
    %79 = vperm.xlu0 %78, %v40
    %v80 = vpop.permute.xlu0 %79
    %83 = vset.pattern.permute.xlu0 0
    %84 = vperm.xlu0 %83, %v41
    %v85 = vpop.permute.xlu0 %84
    %88 = vset.pattern.permute.xlu0 0
    %89 = vperm.xlu0 %88, %v42
    %v90 = vpop.permute.xlu0 %89
    %93 = vset.pattern.permute.xlu0 0
    %94 = vperm.xlu0 %93, %v43
    %v95 = vpop.permute.xlu0 %94
    %98 = vset.pattern.permute.xlu0 0
    %99 = vperm.xlu0 %98, %v44
    %v100 = vpop.permute.xlu0 %99
    %103 = vset.pattern.permute.xlu0 0
    %104 = vperm.xlu0 %103, %v45
    %v105 = vpop.permute.xlu0 %104
    %108 = vset.pattern.permute.xlu0 0
    %109 = vperm.xlu0 %108, %v46
    %v110 = vpop.permute.xlu0 %109
    %113 = vset.pattern.permute.xlu0 0
    %114 = vperm.xlu0 %113, %v47
    %v115 = vpop.permute.xlu0 %114
    %118 = vset.pattern.permute.xlu0 0
    %119 = vperm.xlu0 %118, %v48
    %v120 = vpop.permute.xlu0 %119
    %123 = vset.pattern.permute.xlu0 0
    %124 = vperm.xlu0 %123, %v49
    %v125 = vpop.permute.xlu0 %124
    %128 = vset.pattern.permute.xlu0 0
    %129 = vperm.xlu0 %128, %v50
    %v130 = vpop.permute.xlu0 %129
    %v133 = vperm.slane %v51, 0
    %v135 = vmul.f32 %v55, %v133
    %v136 = vmul.f32 %v60, %v133
    %v137 = vmul.f32 %v65, %v133
    %v138 = vmul.f32 %v70, %v133
    %v139 = vmul.f32 %v75, %v133
    %v140 = vmul.f32 %v80, %v133
    %v141 = vmul.f32 %v85, %v133
    %v142 = vmul.f32 %v90, %v133
    %v143 = vmul.f32 %v95, %v133
    %v144 = vmul.f32 %v100, %v133
    %v145 = vmul.f32 %v105, %v133
    %v146 = vmul.f32 %v110, %v133
    %v147 = vmul.f32 %v115, %v133
    %v148 = vmul.f32 %v120, %v133
    %v149 = vmul.f32 %v125, %v133
    %v150 = vmul.f32 %v130, %v133
    %v151 = vld [vmem:[%s1] sm:$0xff]
    %v152 = vld [vmem:[%s1 + $0x8] sm:$0xff]
    %v153 = vld [vmem:[%s1 + $0x10] sm:$0xff]
    %v154 = vld [vmem:[%s1 + $0x18] sm:$0xff]
    %v155 = vld [vmem:[%s1 + $0x20] sm:$0xff]
    %v156 = vld [vmem:[%s1 + $0x28] sm:$0xff]
    %v157 = vld [vmem:[%s1 + $0x30] sm:$0xff]
    %v158 = vld [vmem:[%s1 + $0x38] sm:$0xff]
    %v159 = vld [vmem:[%s1 + $0x40] sm:$0xff]
    %v160 = vld [vmem:[%s1 + $0x48] sm:$0xff]
    %v161 = vld [vmem:[%s1 + $0x50] sm:$0xff]
    %v162 = vld [vmem:[%s1 + $0x58] sm:$0xff]
    %v163 = vld [vmem:[%s1 + $0x60] sm:$0xff]
    %v164 = vld [vmem:[%s1 + $0x68] sm:$0xff]
    %v165 = vld [vmem:[%s1 + $0x70] sm:$0xff]
    %v166 = vld [vmem:[%s1 + $0x78] sm:$0xff]
    %v167 = vld [vmem:[%s2] sm:$0xff]
    %v168 = vld [vmem:[%s2 + $0x8] sm:$0xff]
    %v169 = vld [vmem:[%s2 + $0x10] sm:$0xff]
    %v170 = vld [vmem:[%s2 + $0x18] sm:$0xff]
    %v171 = vld [vmem:[%s2 + $0x20] sm:$0xff]
    %v172 = vld [vmem:[%s2 + $0x28] sm:$0xff]
    %v173 = vld [vmem:[%s2 + $0x30] sm:$0xff]
    %v174 = vld [vmem:[%s2 + $0x38] sm:$0xff]
    %v175 = vld [vmem:[%s2 + $0x40] sm:$0xff]
    %v176 = vld [vmem:[%s2 + $0x48] sm:$0xff]
    %v177 = vld [vmem:[%s2 + $0x50] sm:$0xff]
    %v178 = vld [vmem:[%s2 + $0x58] sm:$0xff]
    %v179 = vld [vmem:[%s2 + $0x60] sm:$0xff]
    %v180 = vld [vmem:[%s2 + $0x68] sm:$0xff]
    %v181 = vld [vmem:[%s2 + $0x70] sm:$0xff]
    %v182 = vld [vmem:[%s2 + $0x78] sm:$0xff]
    %v183 = vmul.f32 %v167, %v135
    %v184 = vmul.f32 %v168, %v136
    %v185 = vmul.f32 %v169, %v137
    %v186 = vmul.f32 %v170, %v138
    %v187 = vmul.f32 %v171, %v139
    %v188 = vmul.f32 %v172, %v140
    %v189 = vmul.f32 %v173, %v141
    %v190 = vmul.f32 %v174, %v142
    %v191 = vmul.f32 %v175, %v143
    %v192 = vmul.f32 %v176, %v144
    %v193 = vmul.f32 %v177, %v145
    %v194 = vmul.f32 %v178, %v146
    %v195 = vmul.f32 %v179, %v147
    %v196 = vmul.f32 %v180, %v148
    %v197 = vmul.f32 %v181, %v149
    %v198 = vmul.f32 %v182, %v150
    %v199 = vadd.f32 %v151, %v183
    %v200 = vadd.f32 %v152, %v184
    %v201 = vadd.f32 %v153, %v185
    %v202 = vadd.f32 %v154, %v186
    %v203 = vadd.f32 %v155, %v187
    %v204 = vadd.f32 %v156, %v188
    %v205 = vadd.f32 %v157, %v189
    %v206 = vadd.f32 %v158, %v190
    %v207 = vadd.f32 %v159, %v191
    %v208 = vadd.f32 %v160, %v192
    %v209 = vadd.f32 %v161, %v193
    %v210 = vadd.f32 %v162, %v194
    %v211 = vadd.f32 %v163, %v195
    %v212 = vadd.f32 %v164, %v196
    %v213 = vadd.f32 %v165, %v197
    %v214 = vadd.f32 %v166, %v198
    %v215 = vld [vmem:[#allocation2] sm:$0xff]
    %v216 = vld [vmem:[%s0] sm:$0xff]
    %217 = vmatpush.msra.mxu0 %v214
    %218 = vmatpush.msra.mxu0 %v213
    %219 = vmatpush.msra.mxu0 %v212
    %220 = vmatpush.msra.mxu0 %v211
    %221 = vmatpush.msra.mxu0 %v210
    %222 = vmatpush.msra.mxu0 %v209
    %223 = vmatpush.msra.mxu0 %v208
    %224 = vmatpush.msra.mxu0 %v207
    %225 = vmatpush.msra.mxu0 %v206
    %226 = vmatpush.msra.mxu0 %v205
    %227 = vmatpush.msra.mxu0 %v204
    %228 = vmatpush.msra.mxu0 %v203
    %229 = vmatpush.msra.mxu0 %v202
    %230 = vmatpush.msra.mxu0 %v201
    %231 = vmatpush.msra.mxu0 %v200
    %232 = vmatpush.msra.mxu0 %v199
    %233 = vmatmul.f32.gmra.mxu0 %v216
    %v234 = vpop.f32.mrf.mxu0
    %v235 = vadd.f32 0.0, %v234
    %236 = vdwg.mxu0
    %v237 = vadd.f32 %v215, %v235
    %238 = vst [vmem:[#allocation2] sm:$0xff] %v237
    // Predicated region
    $region38: #{noisy_linear_forward.1} parent=1 // pred_check
      %p239 = pneg %p30
    $region39: #{noisy_linear_forward.1} parent=1 // pred_check_branch
      %241 = sbr.rel (%p239) target = $region41
    $region40: #{noisy_linear_forward.1} parent=1 // pred_region
      %v242 = vld [vmem:[%s5] sm:$0x1]
      %v243 = vld [vmem:[%s6] sm:$0x1]
      %v244 = vld [vmem:[%s7] sm:$0x1]
      %v245 = vmul.f32 %v243, %v244
      %v246 = vadd.f32 %v242, %v245
      %v247 = vld [vmem:[#allocation2] sm:$0xff]
      %v249 = vperm.slane %v246, 0
      %v251 = vadd.f32 %v247, %v249
      %252 = vst [vmem:[#allocation3] sm:$0xff] %v251
    $region41: #{noisy_linear_forward.1} parent=1 // pred_fallthru
      _
    // Predicated region
    $region42: #{noisy_linear_forward.1} parent=1 // pred_check
      _
    $region43: #{noisy_linear_forward.1} parent=1 // pred_check_branch
      %254 = sbr.rel (0) target = $region45
    $region44: #{noisy_linear_forward.1} parent=1 // pred_region
      %256 = vsyncadd [#allocation4], 0
      %s258 = sshll.u32 [#allocation3], 4
      %s259 = int_to_ptr.vmem [resolvable:$true] %s258
      %s260 = sshll.u32 %s8, 4
      %s261 = int_to_ptr.hbm [resolvable:$true] %s260
      %263 = dma.vmem_to_hbm [thread:$0]  %s259, 128, %s261, [#allocation4]
    $region45: #{noisy_linear_forward.1} parent=1 // pred_fallthru
      _
    // Predicated region
    $region46: #{noisy_linear_forward.1} parent=1 // pred_check
      _
    $region47: #{noisy_linear_forward.1} parent=1 // pred_check_branch
      %265 = sbr.rel (0) target = $region49
    $region48: #{noisy_linear_forward.1} parent=1 // pred_region
      %267 = dma.done [#allocation4], 128
    $region49: #{noisy_linear_forward.1} parent=1 // pred_fallthru
      _
    %268 = vsyncpa [#allocation4], 1

</llo_original>
